<compile_context>
chip_gen: v7x
topology: tpu7x:2x2x1
jax: 0.10.0
libtpu: 0.0.40
codegen_flags: <defaults>
</compile_context>

<pallas_src>
import jax
import jax.numpy as jnp
from jax import lax
from jax.experimental import pallas as pl
from jax.experimental.pallas import tpu as pltpu

BN_EPS = 1e-4
LANE = 128
SUBLANE = 8
_VMEM_LIMIT = 32 * 1024 * 1024  # scoped VMEM; tiles below stay far under this


def _round_up(x, m):
    return (x + m - 1) // m * m


# ---------------------------------------------------------------------------
# Pass 1: conv matmul (transposed layout) -> compact bf16 intermediate +
#         per-tile partial sums / sums-of-squares.  Grid axis is parallel.
# ---------------------------------------------------------------------------
def _conv_stats_kernel(w_ref, p_ref, y_ref, sum_ref, sq_ref):
    # w_ref: [Cout8, Kp] bf16 (resident across tiles), p_ref: [Kp, tm] bf16.
    y = jnp.dot(w_ref[...], p_ref[...], preferred_element_type=jnp.float32)
    y_ref[...] = y.astype(y_ref.dtype)            # compact [Cout8, tm] store
    # Per-tile partial statistics.  Padded M columns / padded Cout rows are
    # exactly zero so they add nothing; the conv bias is dropped entirely
    # because training-mode BN cancels it.
    s = jnp.sum(y, axis=1, keepdims=True)         # [Cout8, 1] (XLU reduce)
    q = jnp.sum(y * y, axis=1, keepdims=True)
    sum_ref[...] = jnp.broadcast_to(s[None], sum_ref.shape)
    sq_ref[...] = jnp.broadcast_to(q[None], sq_ref.shape)


# ---------------------------------------------------------------------------
# Pass 2: elementwise folded-BN (single FMA) + ELU on the compact intermediate.
# ---------------------------------------------------------------------------
def _bn_elu_kernel(y_ref, scale_ref, shift_ref, o_ref):
    z = y_ref[...].astype(jnp.float32) * scale_ref[...] + shift_ref[...]
    o_ref[...] = jnp.where(z > 0, z, jnp.expm1(z))         # ELU(alpha=1)


def res_down_forward(x_nchw, weight, bias, gamma, beta, *,
                     stride=4, ksize=3, tile_m=2048):
    del bias  # conv bias is exactly cancelled by training-mode BatchNorm
    N, Cin, H, W = x_nchw.shape
    Cout = weight.shape[0]
    pad = ksize // 2
    Ho = (H + 2 * pad - ksize) // stride + 1
    Wo = (W + 2 * pad - ksize) // stride + 1

    M = N * Ho * Wo
    K = Cin * ksize * ksize
    Kp = _round_up(K, SUBLANE)            # sublane alignment only (no 128 pad)
    Cout8 = _round_up(Cout, SUBLANE)      # channels live on sublanes now

    # Tile over M (pixels on lanes).  Keep the double-buffered working set of
    # both passes comfortably inside the scoped VMEM budget (matters on v7x).
    per_col_bytes = 4 * Kp + 12 * Cout8
    tm_cap = max(LANE, ((_VMEM_LIMIT // 2) // per_col_bytes) // LANE * LANE)
    tm = _round_up(min(tile_m, _round_up(M, LANE)), LANE)
    tm = min(tm, tm_cap)
    M_pad = _round_up(M, tm)
    n_tiles = M_pad // tm

    # --- glue: im2col (channel-major (Cin,kh,kw) feature order, matching the
    # PyTorch weight.reshape(Cout, Cin*KH*KW)), transposed to [K, M] so the
    # kernels see pixels on lanes and channels on sublanes. -------------------
    patches = lax.conv_general_dilated_patches(
        x_nchw.astype(jnp.bfloat16),
        filter_shape=(ksize, ksize),
        window_strides=(stride, stride),
        padding=((pad, pad), (pad, pad)),
        dimension_numbers=("NCHW", "OIHW", "NHWC"),
    ).reshape(M, K)                                                   # [M, K]
    patches_t = jnp.pad(patches.T, ((0, Kp - K), (0, M_pad - M)))     # [Kp, M_pad]

    w_t = jnp.pad(weight.reshape(Cout, K).astype(jnp.bfloat16),
                  ((0, Cout8 - Cout), (0, Kp - K)))                   # [Cout8, Kp]

    # --- pass 1: conv matmul -> bf16 [Cout8, M_pad] + per-tile partial stats --
    y_bf, psum, psq = pl.pallas_call(
        _conv_stats_kernel,
        grid=(n_tiles,),
        in_specs=[pl.BlockSpec((Cout8, Kp), lambda i: (0, 0)),
                  pl.BlockSpec((Kp, tm), lambda i: (0, i))],
        out_specs=[pl.BlockSpec((Cout8, tm), lambda i: (0, i)),
                   pl.BlockSpec((1, Cout8, LANE), lambda i: (i, 0, 0)),
                   pl.BlockSpec((1, Cout8, LANE), lambda i: (i, 0, 0))],
        out_shape=[jax.ShapeDtypeStruct((Cout8, M_pad), jnp.bfloat16),
                   jax.ShapeDtypeStruct((n_tiles, Cout8, LANE), jnp.float32),
                   jax.ShapeDtypeStruct((n_tiles, Cout8, LANE), jnp.float32)],
        compiler_params=pltpu.CompilerParams(
            dimension_semantics=("parallel",),
            vmem_limit_bytes=_VMEM_LIMIT),
    )(w_t, patches_t)

    # --- tiny cross-tile reduction + BN fold in plain JAX ---------------------
    s = jnp.sum(psum[:, :Cout, 0], axis=0)            # [Cout]
    q = jnp.sum(psq[:, :Cout, 0], axis=0)
    mean = s / M                                      # true M, not padded
    var = q / M - mean * mean                         # biased var (train BN)
    scale = gamma.astype(jnp.float32) * lax.rsqrt(var + BN_EPS)
    shift = beta.astype(jnp.float32) - mean * scale   # conv bias cancels here
    scale_c = jnp.pad(scale, (0, Cout8 - Cout)).reshape(Cout8, 1)
    shift_c = jnp.pad(shift, (0, Cout8 - Cout)).reshape(Cout8, 1)

    # --- pass 2: normalize + ELU with compact, lane-dense stores --------------
    out_t = pl.pallas_call(
        _bn_elu_kernel,
        grid=(n_tiles,),
        in_specs=[pl.BlockSpec((Cout8, tm), lambda i: (0, i)),
                  pl.BlockSpec((Cout8, 1), lambda i: (0, 0)),
                  pl.BlockSpec((Cout8, 1), lambda i: (0, 0))],
        out_specs=pl.BlockSpec((Cout8, tm), lambda i: (0, i)),
        out_shape=jax.ShapeDtypeStruct((Cout8, M_pad), jnp.float32),
        compiler_params=pltpu.CompilerParams(
            dimension_semantics=("parallel",),
            vmem_limit_bytes=_VMEM_LIMIT),
    )(y_bf, scale_c, shift_c)

    # --- glue: strip padding, back to NCHW ------------------------------------
    out = out_t[:Cout, :M].reshape(Cout, N, Ho, Wo)
    return jnp.transpose(out, (1, 0, 2, 3))


def res_down_ref(x, weight, bias, gamma, beta, *, stride=4, ksize=3):
    """Pure-JAX reference matching PyTorch ResDown.forward (training-mode BN)."""
    pad = ksize // 2
    y = lax.conv_general_dilated(
        x.astype(jnp.float32), weight.astype(jnp.float32),
        window_strides=(stride, stride),
        padding=((pad, pad), (pad, pad)),
        dimension_numbers=("NCHW", "OIHW", "NCHW"))
    y = y + bias.reshape(1, -1, 1, 1)
    mean = jnp.mean(y, axis=(0, 2, 3), keepdims=True)
    var = jnp.mean((y - mean) ** 2, axis=(0, 2, 3), keepdims=True)
    yhat = (y - mean) / jnp.sqrt(var + BN_EPS)
    z = yhat * gamma.reshape(1, -1, 1, 1) + beta.reshape(1, -1, 1, 1)
    return jnp.where(z > 0, z, jnp.expm1(z))


if __name__ == "__main__":
    # Small shapes consistent with the module: x is NCHW.
    N, C_in, H, W = 2, 4, 16, 16
    C_out, K = 8, 3

    key = jax.random.PRNGKey(0)
    kx, kw, kb, kg, kbeta = jax.random.split(key, 5)

    x = jax.random.normal(kx, (N, C_in, H, W), dtype=jnp.float32)
    weight = 0.1 * jax.random.normal(kw, (C_out, C_in, K, K), dtype=jnp.float32)
    bias = 0.1 * jax.random.normal(kb, (C_out,), dtype=jnp.float32)
    gamma = 1.0 + 0.1 * jax.random.normal(kg, (C_out,), dtype=jnp.float32)
    beta = 0.1 * jax.random.normal(kbeta, (C_out,), dtype=jnp.float32)

    out = jax.block_until_ready(res_down_forward(x, weight, bias, gamma, beta))
    ref = jax.block_until_ready(res_down_ref(x, weight, bias, gamma, beta))

    assert out.shape == (N, C_out, 4, 4), out.shape
    # bf16 streamed operands + bf16 compact intermediate (f32 accumulation and
    # f32 elementwise math) -> slightly loose tolerance.
    assert jnp.allclose(out, ref, atol=4e-2, rtol=4e-2), "mismatch vs reference"

    print("KERNEL_OK")
</pallas_src>

<mosaic_0001>
module attributes {stable_mosaic.version = 11 : i64} {
  func.func @_conv_stats_kernel(%arg0: i32, %arg1: memref<8x40xbf16, #tpu.memory_space<vmem>>, %arg2: memref<40x128xbf16, #tpu.memory_space<vmem>>, %arg3: memref<8x128xbf16, #tpu.memory_space<vmem>>, %arg4: memref<1x8x128xf32, #tpu.memory_space<vmem>>, %arg5: memref<1x8x128xf32, #tpu.memory_space<vmem>>) attributes {dimension_semantics = [#tpu.dimension_semantics<parallel>], iteration_bounds = array<i64: 1>, scalar_prefetch = 0 : i64, scratch_operands = 0 : i64, tpu.core_type = #tpu.core_type<tc>, window_params = [{pipeline_mode = #tpu.pipeline_mode<synchronous>, transform_indices = @transform_0, window_bounds = array<i64: 8, 40>}, {transform_indices = @transform_1, window_bounds = array<i64: 40, 128>}, {transform_indices = @transform_2, window_bounds = array<i64: 8, 128>}, {transform_indices = @transform_3, window_bounds = array<i64: 1, 8, 128>}, {transform_indices = @transform_4, window_bounds = array<i64: 1, 8, 128>}]} {
    %c0 = arith.constant 0 : index
    %c0_0 = arith.constant 0 : index
    %0 = vector.load %arg1[%c0, %c0_0] : memref<8x40xbf16, #tpu.memory_space<vmem>>, vector<8x40xbf16>
    %c0_1 = arith.constant 0 : index
    %c0_2 = arith.constant 0 : index
    %1 = vector.load %arg2[%c0_1, %c0_2] : memref<40x128xbf16, #tpu.memory_space<vmem>>, vector<40x128xbf16>
    %cst = arith.constant dense<0.000000e+00> : vector<8x128xf32>
    %2 = tpu.matmul %0, %1, %cst {dimension_numbers = #tpu.dot_dimension_numbers<[1], [0], [0], [1], [0, 0, 1, 1], [], []>} : vector<8x40xbf16>, vector<40x128xbf16>, vector<8x128xf32> -> vector<8x128xf32>
    %3 = arith.truncf %2 : vector<8x128xf32> to vector<8x128xbf16>
    %c0_3 = arith.constant 0 : index
    %c0_4 = arith.constant 0 : index
    %4 = vector.load %arg3[%c0_3, %c0_4] : memref<8x128xbf16, #tpu.memory_space<vmem>>, vector<8x128xbf16>
    tpu.vector_store %arg3[%c0_3, %c0_4], %3 {strides = array<i32>} : memref<8x128xbf16, #tpu.memory_space<vmem>>, vector<8x128xbf16>,
    %cst_5 = arith.constant dense<0.000000e+00> : vector<8xf32>
    %5 = vector.multi_reduction <add>, %2, %cst_5 [1] : vector<8x128xf32> to vector<8xf32>
    %6 = vector.shape_cast %5 : vector<8xf32> to vector<8x1xf32>
    %7 = arith.mulf %2, %2 : vector<8x128xf32>
    %cst_6 = arith.constant dense<0.000000e+00> : vector<8xf32>
    %8 = vector.multi_reduction <add>, %7, %cst_6 [1] : vector<8x128xf32> to vector<8xf32>
    %9 = vector.shape_cast %8 : vector<8xf32> to vector<8x1xf32>
    %10 = vector.shape_cast %6 : vector<8x1xf32> to vector<1x8x1xf32>
    %11 = vector.shape_cast %10 : vector<1x8x1xf32> to vector<1x8x1xf32>
    %12 = vector.broadcast %11 : vector<1x8x1xf32> to vector<1x8x128xf32>
    %c0_7 = arith.constant 0 : index
    %c0_8 = arith.constant 0 : index
    %c0_9 = arith.constant 0 : index
    %13 = vector.load %arg4[%c0_7, %c0_8, %c0_9] : memref<1x8x128xf32, #tpu.memory_space<vmem>>, vector<1x8x128xf32>
    tpu.vector_store %arg4[%c0_7, %c0_8, %c0_9], %12 {strides = array<i32>} : memref<1x8x128xf32, #tpu.memory_space<vmem>>, vector<1x8x128xf32>,
    %14 = vector.shape_cast %9 : vector<8x1xf32> to vector<1x8x1xf32>
    %15 = vector.shape_cast %14 : vector<1x8x1xf32> to vector<1x8x1xf32>
    %16 = vector.broadcast %15 : vector<1x8x1xf32> to vector<1x8x128xf32>
    %c0_10 = arith.constant 0 : index
    %c0_11 = arith.constant 0 : index
    %c0_12 = arith.constant 0 : index
    %17 = vector.load %arg5[%c0_10, %c0_11, %c0_12] : memref<1x8x128xf32, #tpu.memory_space<vmem>>, vector<1x8x128xf32>
    tpu.vector_store %arg5[%c0_10, %c0_11, %c0_12], %16 {strides = array<i32>} : memref<1x8x128xf32, #tpu.memory_space<vmem>>, vector<1x8x128xf32>,
    return
  }
  func.func @transform_0(%arg0: i32) -> (i32, i32) {
    %c0_i32 = arith.constant 0 : i32
    %c0_i32_0 = arith.constant 0 : i32
    %c0_i32_1 = arith.constant 0 : i32
    return %c0_i32, %c0_i32_0 : i32, i32
  }
  func.func @transform_1(%arg0: i32) -> (i32, i32) {
    %c0_i32 = arith.constant 0 : i32
    %c0_i32_0 = arith.constant 0 : i32
    return %c0_i32, %arg0 : i32, i32
  }
  func.func @transform_2(%arg0: i32) -> (i32, i32) {
    %c0_i32 = arith.constant 0 : i32
    %c0_i32_0 = arith.constant 0 : i32
    return %c0_i32, %arg0 : i32, i32
  }
  func.func @transform_3(%arg0: i32) -> (i32, i32, i32) {
    %c0_i32 = arith.constant 0 : i32
    %c0_i32_0 = arith.constant 0 : i32
    %c0_i32_1 = arith.constant 0 : i32
    return %arg0, %c0_i32, %c0_i32_0 : i32, i32, i32
  }
  func.func @transform_4(%arg0: i32) -> (i32, i32, i32) {
    %c0_i32 = arith.constant 0 : i32
    %c0_i32_0 = arith.constant 0 : i32
    %c0_i32_1 = arith.constant 0 : i32
    return %arg0, %c0_i32, %c0_i32_0 : i32, i32, i32
  }
}

</mosaic_0001>

<llo_original>
// kernel: tpu_custom_call.1
$region0: #{tpu_custom_call.1}
  #allocation0 [shape = 'u32[]', space=smem, size = 0x4, offset = 0x4, fixed_abs, tag = 'smem constant byte address 0x4 - core index']
  #allocation1 [shape = 'u32[144,128]{1,0:T(1,128)}', space=vmem, size = 0x12000, scoped, tag = 'internal scratch']
  %s0 = inlined_call_operand.hbm [shape: bf16[8,40], index: 0, kind: input, shape index: {}]
  %s1 = inlined_call_operand.hbm [shape: bf16[40,128], index: 1, kind: input, shape index: {}]
  %s2 = inlined_call_operand.hbm [shape: bf16[8,128], index: 2, kind: output, shape index: {0}]
  %s3 = inlined_call_operand.hbm [shape: f32[1,8,128], index: 3, kind: output, shape index: {1}]
  %s4 = inlined_call_operand.hbm [shape: f32[1,8,128], index: 4, kind: output, shape index: {2}]
  %5 = xla_tuple %s2, %s3, %s4
  %s6 = sld [smem:[#allocation0]]
  $region42: #{tpu_custom_call.1} parent=0
    _
  %s8 = ssub.s32 1, %s6
  %s9 = scalar_select 0, %s8, %s6
  $region1: #{tpu_custom_call.1} parent=0
    #allocation2 [shape = 'u8[2048]{0}', space=vmem, size = 0x800, scoped, tag = 'input window, operand 0, single buffered']
    #allocation3 [shape = 's32[1]{0}', space=sflag, size = 0x4, scoped, tag = 'scoped memory for tpu_custom_call.1']
    #allocation4 [shape = 's32[1]{0}', space=sflag, size = 0x4, scoped, tag = 'scoped memory for tpu_custom_call.1']
    #allocation5 [shape = 'u8[10240]{0}', space=vmem, size = 0x2800, scoped, tag = 'input window, operand 1, single buffered']
    #allocation6 [shape = 's32[1]{0}', space=sflag, size = 0x4, scoped, tag = 'scoped memory for tpu_custom_call.1']
    #allocation7 [shape = 'u8[2048]{0}', space=vmem, size = 0x800, scoped, tag = 'output window, operand 0, single buffered']
    #allocation8 [shape = 'u8[4096]{0}', space=vmem, size = 0x1000, scoped, tag = 'output window, operand 1, single buffered']
    #allocation9 [shape = 's32[1]{0}', space=sflag, size = 0x4, scoped, tag = 'scoped memory for tpu_custom_call.1']
    #allocation10 [shape = 'u8[4096]{0}', space=vmem, size = 0x1000, scoped, tag = 'output window, operand 2, single buffered']
    %10 = vsyncpa [#allocation3], 0
    %11 = vsyncpa [#allocation6], 0
    %12 = vsyncpa [#allocation4], 0
    %13 = vsyncpa [#allocation9], 0
    // Predicated region
    $region2: #{tpu_custom_call.1} parent=1 // pred_check
      _
    $region3: #{tpu_custom_call.1} parent=1 // pred_check_branch
      %15 = sbr.rel (0) target = $region5
    $region4: #{tpu_custom_call.1} parent=1 // pred_region
      %s17 = ssub.s32 64, 64
      %18 = vsyncadd [#allocation3], %s17
      %s20 = sshll.u32 [#allocation2], 4
      %s21 = int_to_ptr.vmem [resolvable:$true] %s20
      %23 = dma.hbm_to_vmem [thread:$0]  %s0, 64, %s21, [#allocation3]
    $region5: #{tpu_custom_call.1} parent=1 // pred_fallthru
      _
    // Predicated region
    $region6: #{tpu_custom_call.1} parent=1 // pred_check
      _
    $region7: #{tpu_custom_call.1} parent=1 // pred_check_branch
      %25 = sbr.rel (0) target = $region9
    $region8: #{tpu_custom_call.1} parent=1 // pred_region
      %s27 = ssub.s32 320, 320
      %28 = vsyncadd [#allocation6], %s27
      %s29 = sshll.u32 [#allocation5], 4
      %s30 = int_to_ptr.vmem [resolvable:$true] %s29
      %35 = dma.hbm_to_vmem [thread:$0]  %s1, 320, %s30, [#allocation6], 64, 64, 4
    $region9: #{tpu_custom_call.1} parent=1 // pred_fallthru
      _
    // Predicated region
    $region10: #{tpu_custom_call.1} parent=1 // pred_check
      _
    $region11: #{tpu_custom_call.1} parent=1 // pred_check_branch
      %37 = sbr.rel (0) target = $region13
    $region12: #{tpu_custom_call.1} parent=1 // pred_region
      %38 = dma.done [#allocation3], 64
    $region13: #{tpu_custom_call.1} parent=1 // pred_fallthru
      _
    // Predicated region
    $region14: #{tpu_custom_call.1} parent=1 // pred_check
      _
    $region15: #{tpu_custom_call.1} parent=1 // pred_check_branch
      %40 = sbr.rel (0) target = $region17
    $region16: #{tpu_custom_call.1} parent=1 // pred_region
      %41 = dma.done [#allocation6], 320
    $region17: #{tpu_custom_call.1} parent=1 // pred_fallthru
      _
    %v43 = vld [vmem:[#allocation2] sm:$0xf]
    %v44 = vld [vmem:[#allocation5] sm:$0xf]
    %v45 = vld [vmem:[#allocation5 + $0x4] sm:$0xf]
    %v46 = vld [vmem:[#allocation5 + $0x8] sm:$0xf]
    %v47 = vld [vmem:[#allocation5 + $0xc] sm:$0xf]
    %v48 = vld [vmem:[#allocation5 + $0x10] sm:$0xf]
    %v54 = vunpack.c.l.b16 %v44
    %v55 = vunpack.c.l.b16 %v45
    %v56 = vunpack.c.l.b16 %v46
    %v57 = vunpack.c.l.b16 %v47
    %v58 = vunpack.c.l.b16 %v48
    %v59 = vpack.c.b16 %v55, %v54
    %v60 = vpack.c.b16 %v57, %v56
    %v61 = vpack.c.b16 %v58, %v58
    %vm64 = vcmask 326656
    %v66 = vsel %vm64, %v43, 0
    %vm68 = vcmask 1043456
    %v70 = vsel %vm68, %v61, 0
    %72 = vmatprep.subr.bf16.mxu0 0
    %73 = vmatpush1.bf16.msra.mxu0 %v59
    %74 = vmatprep.subr.bf16.mxu0 0
    %75 = vmatpush1.bf16.msra.mxu0 %v60
    %76 = vmatprep.subr.bf16.mxu0 0
    %77 = vmatpush1.bf16.msra.mxu0 %v70
    %78 = vmatprep.subr.bf16.mxu0 0
    %79 = vmatpush1.bf16.msra.mxu0 0
    %80 = vmatprep.subr.bf16.mxu0 0
    %81 = vmatpush1.bf16.msra.mxu0 0
    %82 = vmatprep.subr.bf16.mxu0 0
    %83 = vmatpush1.bf16.msra.mxu0 0
    %84 = vmatprep.subr.bf16.mxu0 0
    %85 = vmatpush1.bf16.msra.mxu0 0
    %86 = vmatprep.subr.bf16.mxu0 0
    %87 = vmatpush1.bf16.msra.mxu0 0
    %88 = vmatprep.subr.bf16.mxu0 0
    %89 = vmatpush1.bf16.msra.mxu0 0
    %90 = vmatprep.subr.bf16.mxu0 0
    %91 = vmatpush1.bf16.msra.mxu0 0
    %92 = vmatprep.subr.bf16.mxu0 0
    %93 = vmatpush1.bf16.msra.mxu0 0
    %94 = vmatprep.subr.bf16.mxu0 0
    %95 = vmatpush1.bf16.msra.mxu0 0
    %96 = vmatprep.subr.bf16.mxu0 0
    %97 = vmatpush1.bf16.msra.mxu0 0
    %98 = vmatprep.subr.bf16.mxu0 0
    %99 = vmatpush1.bf16.msra.mxu0 0
    %100 = vmatprep.subr.bf16.mxu0 0
    %101 = vmatpush1.bf16.msra.mxu0 0
    %102 = vmatprep.subr.bf16.mxu0 0
    %103 = vmatpush1.bf16.msra.mxu0 0
    %104 = vmatprep.mubr.bf16.mxu0 0
    %105 = vmatmul.mubr.bf16.gmra.mrb[0].mxu0 %v66
    %v106 = vpop.f32.mrb[0].mxu0
    %v107 = vadd.f32 0.0, %v106
    %v108 = vpop.f32.mrb[0].mxu0
    %v109 = vpop.f32.mrb[0].mxu0
    %v110 = vpop.f32.mrb[0].mxu0
    %111 = vdwg.mxu0
    %v112 = vpack.c.bf16 %v107, %v107
    %113 = vst [vmem:[#allocation7] sm:$0xf] %v112
    %114 = vadd.xlane.f32.xlu0 %v107
    %v115 = vpop.xlane.xlu0 %114
    %v116 = vmul.f32 %v107, %v107
    %117 = vadd.xlane.f32.xlu0 %v116
    %v118 = vpop.xlane.xlu0 %117
    %119 = vst [vmem:[#allocation8] sm:$0xff] %v115
    %120 = vst [vmem:[#allocation10] sm:$0xff] %v118
    // Predicated region
    $region18: #{tpu_custom_call.1} parent=1 // pred_check
      _
    $region19: #{tpu_custom_call.1} parent=1 // pred_check_branch
      %122 = sbr.rel (0) target = $region21
    $region20: #{tpu_custom_call.1} parent=1 // pred_region
      %s124 = ssub.s32 64, 64
      %125 = vsyncadd [#allocation4], %s124
      %s127 = sshll.u32 [#allocation7], 4
      %s128 = int_to_ptr.vmem [resolvable:$true] %s127
      %130 = dma.vmem_to_hbm [thread:$0]  %s128, 64, %s2, [#allocation4]
    $region21: #{tpu_custom_call.1} parent=1 // pred_fallthru
      _
    // Predicated region
    $region22: #{tpu_custom_call.1} parent=1 // pred_check
      _
    $region23: #{tpu_custom_call.1} parent=1 // pred_check_branch
      %132 = sbr.rel (0) target = $region25
    $region24: #{tpu_custom_call.1} parent=1 // pred_region
      %s134 = ssub.s32 128, 128
      %135 = vsyncadd [#allocation9], %s134
      %s137 = sshll.u32 [#allocation8], 4
      %s138 = int_to_ptr.vmem [resolvable:$true] %s137
      %140 = dma.vmem_to_hbm [thread:$0]  %s138, 128, %s3, [#allocation9]
    $region25: #{tpu_custom_call.1} parent=1 // pred_fallthru
      _
    // Predicated region
    $region26: #{tpu_custom_call.1} parent=1 // pred_check
      _
    $region27: #{tpu_custom_call.1} parent=1 // pred_check_branch
      %142 = sbr.rel (0) target = $region29
    $region28: #{tpu_custom_call.1} parent=1 // pred_region
      %s144 = ssub.s32 128, 128
      %145 = vsyncadd [#allocation9], %s144
      %s147 = sshll.u32 [#allocation10], 4
      %s148 = int_to_ptr.vmem [resolvable:$true] %s147
      %150 = dma.vmem_to_hbm [thread:$0]  %s148, 128, %s4, [#allocation9]
    $region29: #{tpu_custom_call.1} parent=1 // pred_fallthru
      _
    // Predicated region
    $region30: #{tpu_custom_call.1} parent=1 // pred_check
      _
    $region31: #{tpu_custom_call.1} parent=1 // pred_check_branch
      %152 = sbr.rel (0) target = $region33
    $region32: #{tpu_custom_call.1} parent=1 // pred_region
      %153 = dma.done [#allocation4], 64
    $region33: #{tpu_custom_call.1} parent=1 // pred_fallthru
      _
    // Predicated region
    $region34: #{tpu_custom_call.1} parent=1 // pred_check
      _
    $region35: #{tpu_custom_call.1} parent=1 // pred_check_branch
      %155 = sbr.rel (0) target = $region37
    $region36: #{tpu_custom_call.1} parent=1 // pred_region
      %156 = dma.done [#allocation9], 128
    $region37: #{tpu_custom_call.1} parent=1 // pred_fallthru
      _
    // Predicated region
    $region38: #{tpu_custom_call.1} parent=1 // pred_check
      _
    $region39: #{tpu_custom_call.1} parent=1 // pred_check_branch
      %158 = sbr.rel (0) target = $region41
    $region40: #{tpu_custom_call.1} parent=1 // pred_region
      %159 = dma.done [#allocation9], 128
    $region41: #{tpu_custom_call.1} parent=1 // pred_fallthru
      _
    %160 = vsyncpa [#allocation3], 1
    %161 = vsyncpa [#allocation6], 1
    %162 = vsyncpa [#allocation4], 1
    %163 = vsyncpa [#allocation9], 1

</llo_original>
